<compile_context>
chip_gen: v6e
topology: v6e:2x2x1
jax: 0.10.0
libtpu: 0.0.40
codegen_flags: <defaults>
</compile_context>

<pallas_src>
import jax
import jax.numpy as jnp
from jax.experimental import pallas as pl
from jax.experimental.pallas import tpu as pltpu

LANE = 128
SUBLANE = 8


def _round_up(x, m):
    return ((x + m - 1) // m) * m


def ggnn_kernel(adj_ref, xr_ref, wp_ref, wa_ref, wx_ref, wh1_ref, ba_ref, out_ref):
    F = wp_ref.shape[1]            # padded F_out (multiple of 128)
    F_in = xr_ref.shape[1]
    tm = adj_ref.shape[0]          # row tile

    # Row block of the raw features that corresponds to this grid step.
    row0 = pl.multiple_of(pl.program_id(0) * tm, SUBLANE)
    x_raw_blk = xr_ref[pl.ds(row0, tm), :]

    # x = proj(x) for this row block (no bias).
    x = jnp.dot(x_raw_blk, wp_ref[...], preferred_element_type=jnp.float32)

    # a = adj @ proj(x_all).  Reassociate (adj @ x_raw) @ wp when F_in <= F so
    # the N^2 contraction runs over the narrow input-feature dim (trace-time
    # static branch, mathematically identical).
    if F_in <= F:
        ax = jnp.dot(adj_ref[...], xr_ref[...], preferred_element_type=jnp.float32)
        a = jnp.dot(ax, wp_ref[...], preferred_element_type=jnp.float32)
    else:
        xp_all = jnp.dot(xr_ref[...], wp_ref[...], preferred_element_type=jnp.float32)
        a = jnp.dot(adj_ref[...], xp_all, preferred_element_type=jnp.float32)

    # Fused gate matmuls:  ga = [z0|r0|h0] + [bz|br|bh],  gx = [z1|r1].
    ga = jnp.dot(a, wa_ref[...], preferred_element_type=jnp.float32) + ba_ref[...]
    gx = jnp.dot(x, wx_ref[...], preferred_element_type=jnp.float32)

    z = jax.nn.sigmoid(ga[:, 0 * F:1 * F] + gx[:, 0 * F:1 * F])
    r = jax.nn.sigmoid(ga[:, 1 * F:2 * F] + gx[:, 1 * F:2 * F])
    h = jnp.tanh(ga[:, 2 * F:3 * F] +
                 jnp.dot(r * x, wh1_ref[...], preferred_element_type=jnp.float32))

    # feat = h * z + x * (1 - z)   (full-lane, unmasked store)
    out_ref[...] = h * z + x * (1.0 - z)


def ggnn_forward(adj, x, params, *, row_tile=None):
    """adj: [N, N], x: [N, F_in]. params: dict of pre-transposed weights/biases."""
    N, F_in = x.shape
    F_out = params["wp"].shape[1]
    F_pad = _round_up(F_out, LANE)
    f32 = jnp.float32

    # ---- choose a row tile that keeps the streamed operands inside VMEM ----
    N8 = _round_up(N, SUBLANE)
    if row_tile is None:
        budget = 20 * 1024 * 1024                       # bytes for streamed blocks
        per_row = 2 * 4 * (N8 + F_pad)                  # adj row + out row, double-buffered
        cap = max(SUBLANE, (budget // per_row) // SUBLANE * SUBLANE)
        row_tile = max(SUBLANE, min(512, N8, cap))
    tm = max(SUBLANE, _round_up(row_tile, SUBLANE))
    N_pad = _round_up(N, tm)

    # ---- zero-pad inputs to padded node / lane-dense feature shapes ----
    adj_p = jnp.pad(adj.astype(f32), ((0, N_pad - N), (0, N_pad - N)))
    x_p = jnp.pad(x.astype(f32), ((0, N_pad - N), (0, 0)))

    def pad_cols(w):                                    # [r, F_out] -> [r, F_pad]
        return jnp.pad(w.astype(f32), ((0, 0), (0, F_pad - w.shape[1])))

    def pad_gate(w):                                    # [F_out, F_out] -> [F_pad, F_pad]
        return jnp.pad(w.astype(f32),
                       ((0, F_pad - w.shape[0]), (0, F_pad - w.shape[1])))

    wp = pad_cols(params["wp"])                                          # [F_in, F_pad]
    wa = jnp.concatenate([pad_gate(params["wz0"]), pad_gate(params["wr0"]),
                          pad_gate(params["wh0"])], axis=1)              # [F_pad, 3*F_pad]
    wx = jnp.concatenate([pad_gate(params["wz1"]),
                          pad_gate(params["wr1"])], axis=1)              # [F_pad, 2*F_pad]
    wh1 = pad_gate(params["wh1"])                                        # [F_pad, F_pad]
    ba = jnp.concatenate([pad_cols(params["bz0"] + params["bz1"]),
                          pad_cols(params["br0"] + params["br1"]),
                          pad_cols(params["bh0"] + params["bh1"])], axis=1)  # [1, 3*F_pad]

    # ---- explicit VMEM budget (re-derived for v7x's 64 MiB) ----
    est = 4 * (2 * tm * N_pad                     # adj row block, double-buffered
               + 2 * N_pad * F_in                 # resident raw features
               + 2 * (F_in * F_pad + 6 * F_pad * F_pad + 3 * F_pad)  # weights + bias
               + 2 * tm * F_pad                   # output block, double-buffered
               + 12 * tm * F_pad)                 # in-kernel temporaries
    vmem_limit = int(min(32 * 1024 * 1024, max(2 * est, 16 * 1024 * 1024)))

    grid = (N_pad // tm,)

    def full(shape):
        return pl.BlockSpec(shape, lambda i, _s=shape: (0,) * len(_s))

    res = pl.pallas_call(
        ggnn_kernel,
        out_shape=jax.ShapeDtypeStruct((N_pad, F_pad), f32),
        grid=grid,
        in_specs=[
            pl.BlockSpec((tm, N_pad), lambda i: (i, 0)),   # adj: streamed row tiles
            full((N_pad, F_in)),                            # raw features (resident)
            full((F_in, F_pad)),                            # wp
            full((F_pad, 3 * F_pad)),                       # fused W_a
            full((F_pad, 2 * F_pad)),                       # fused W_x
            full((F_pad, F_pad)),                           # wh1
            full((1, 3 * F_pad)),                           # fused bias slab
        ],
        out_specs=pl.BlockSpec((tm, F_pad), lambda i: (i, 0)),
        compiler_params=pltpu.CompilerParams(
            dimension_semantics=("parallel",),              # v7x: split rows across TCs
            vmem_limit_bytes=vmem_limit),
    )(adj_p, x_p, wp, wa, wx, wh1, ba)

    return res[:N, :F_out]


def init_params(key, in_features, out_features):
    ks = jax.random.split(key, 13)

    def w(k, fi, fo):
        return jax.random.normal(k, (fi, fo), jnp.float32) * 0.1

    def b(k, fo):
        return jax.random.normal(k, (1, fo), jnp.float32) * 0.1

    return {
        "wp":  w(ks[0], in_features, out_features),
        "wz0": w(ks[1], out_features, out_features), "bz0": b(ks[2], out_features),
        "wz1": w(ks[3], out_features, out_features), "bz1": b(ks[4], out_features),
        "wr0": w(ks[5], out_features, out_features), "br0": b(ks[6], out_features),
        "wr1": w(ks[7], out_features, out_features), "br1": b(ks[8], out_features),
        "wh0": w(ks[9], out_features, out_features), "bh0": b(ks[10], out_features),
        "wh1": w(ks[11], out_features, out_features), "bh1": b(ks[12], out_features),
    }


def ggnn_reference(adj, x, p):
    """Pure-JAX reference mirroring the PyTorch forward (eval mode)."""
    x = x @ p["wp"]
    a = adj @ x
    z = jax.nn.sigmoid(a @ p["wz0"] + p["bz0"] + x @ p["wz1"] + p["bz1"])
    r = jax.nn.sigmoid(a @ p["wr0"] + p["br0"] + x @ p["wr1"] + p["br1"])
    h = jnp.tanh(a @ p["wh0"] + p["bh0"] + (r * x) @ p["wh1"] + p["bh1"])
    return h * z + x * (1.0 - z)


if __name__ == "__main__":
    key = jax.random.PRNGKey(0)
    k_adj, k_x, k_p, k_adj2, k_x2 = jax.random.split(key, 5)

    F_IN, F_OUT = 8, 32
    params = init_params(k_p, F_IN, F_OUT)

    # --- Test 1: small graph, single grid step ---
    N = 16
    adj_raw = jax.random.uniform(k_adj, (N, N), jnp.float32)
    adj = adj_raw / jnp.sum(adj_raw, axis=-1, keepdims=True)
    x = jax.random.normal(k_x, (N, F_IN), jnp.float32)

    out = jax.block_until_ready(ggnn_forward(adj, x, params))
    ref = ggnn_reference(adj, x, params)
    assert out.shape == (N, F_OUT)
    assert jnp.allclose(out, ref, atol=1e-5, rtol=1e-5), "mismatch vs reference (N=16)"

    # --- Test 2: row-tiled grid path with node padding (N=100 -> 4 tiles of 32) ---
    N2 = 100
    adj2_raw = jax.random.uniform(k_adj2, (N2, N2), jnp.float32)
    adj2 = adj2_raw / jnp.sum(adj2_raw, axis=-1, keepdims=True)
    x2 = jax.random.normal(k_x2, (N2, F_IN), jnp.float32)

    out2 = jax.block_until_ready(ggnn_forward(adj2, x2, params, row_tile=32))
    ref2 = ggnn_reference(adj2, x2, params)
    assert out2.shape == (N2, F_OUT)
    assert jnp.allclose(out2, ref2, atol=1e-5, rtol=1e-5), "mismatch vs reference (N=100)"

    print("KERNEL_OK")
</pallas_src>

<mosaic_0001>
module attributes {stable_mosaic.version = 11 : i64} {
  func.func @ggnn_kernel(%arg0: i32, %arg1: memref<16x16xf32, #tpu.memory_space<vmem>>, %arg2: memref<16x8xf32, #tpu.memory_space<vmem>>, %arg3: memref<8x128xf32, #tpu.memory_space<vmem>>, %arg4: memref<128x384xf32, #tpu.memory_space<vmem>>, %arg5: memref<128x256xf32, #tpu.memory_space<vmem>>, %arg6: memref<128x128xf32, #tpu.memory_space<vmem>>, %arg7: memref<1x384xf32, #tpu.memory_space<vmem>>, %arg8: memref<16x128xf32, #tpu.memory_space<vmem>>) attributes {dimension_semantics = [#tpu.dimension_semantics<parallel>], iteration_bounds = array<i64: 1>, scalar_prefetch = 0 : i64, scratch_operands = 0 : i64, tpu.core_type = #tpu.core_type<tc>, window_params = [{transform_indices = @transform_0, window_bounds = array<i64: 16, 16>}, {pipeline_mode = #tpu.pipeline_mode<synchronous>, transform_indices = @transform_1, window_bounds = array<i64: 16, 8>}, {pipeline_mode = #tpu.pipeline_mode<synchronous>, transform_indices = @transform_2, window_bounds = array<i64: 8, 128>}, {pipeline_mode = #tpu.pipeline_mode<synchronous>, transform_indices = @transform_3, window_bounds = array<i64: 128, 384>}, {pipeline_mode = #tpu.pipeline_mode<synchronous>, transform_indices = @transform_4, window_bounds = array<i64: 128, 256>}, {pipeline_mode = #tpu.pipeline_mode<synchronous>, transform_indices = @transform_5, window_bounds = array<i64: 128, 128>}, {pipeline_mode = #tpu.pipeline_mode<synchronous>, transform_indices = @transform_6, window_bounds = array<i64: 1, 384>}, {transform_indices = @transform_7, window_bounds = array<i64: 16, 128>}]} {
    %c16_i32 = arith.constant 16 : i32
    %0 = arith.muli %arg0, %c16_i32 : i32
    %1 = tpu.assume_multiple %0, 8 : i32
    %2 = arith.index_cast %1 : i32 to index
    %c0 = arith.constant 0 : index
    %3 = vector.load %arg2[%2, %c0] : memref<16x8xf32, #tpu.memory_space<vmem>>, vector<16x8xf32>
    %c0_0 = arith.constant 0 : index
    %c0_1 = arith.constant 0 : index
    %4 = vector.load %arg3[%c0_0, %c0_1] : memref<8x128xf32, #tpu.memory_space<vmem>>, vector<8x128xf32>
    %cst = arith.constant dense<0.000000e+00> : vector<16x128xf32>
    %5 = tpu.matmul %3, %4, %cst {dimension_numbers = #tpu.dot_dimension_numbers<[1], [0], [0], [1], [0, 0, 1, 1], [], []>} : vector<16x8xf32>, vector<8x128xf32>, vector<16x128xf32> -> vector<16x128xf32>
    %c0_2 = arith.constant 0 : index
    %c0_3 = arith.constant 0 : index
    %6 = vector.load %arg1[%c0_2, %c0_3] : memref<16x16xf32, #tpu.memory_space<vmem>>, vector<16x16xf32>
    %c0_4 = arith.constant 0 : index
    %c0_5 = arith.constant 0 : index
    %7 = vector.load %arg2[%c0_4, %c0_5] : memref<16x8xf32, #tpu.memory_space<vmem>>, vector<16x8xf32>
    %cst_6 = arith.constant dense<0.000000e+00> : vector<16x8xf32>
    %8 = tpu.matmul %6, %7, %cst_6 {dimension_numbers = #tpu.dot_dimension_numbers<[1], [0], [0], [1], [0, 0, 1, 1], [], []>} : vector<16x16xf32>, vector<16x8xf32>, vector<16x8xf32> -> vector<16x8xf32>
    %c0_7 = arith.constant 0 : index
    %c0_8 = arith.constant 0 : index
    %9 = vector.load %arg3[%c0_7, %c0_8] : memref<8x128xf32, #tpu.memory_space<vmem>>, vector<8x128xf32>
    %cst_9 = arith.constant dense<0.000000e+00> : vector<16x128xf32>
    %10 = tpu.matmul %8, %9, %cst_9 {dimension_numbers = #tpu.dot_dimension_numbers<[1], [0], [0], [1], [0, 0, 1, 1], [], []>} : vector<16x8xf32>, vector<8x128xf32>, vector<16x128xf32> -> vector<16x128xf32>
    %c0_10 = arith.constant 0 : index
    %c0_11 = arith.constant 0 : index
    %11 = vector.load %arg4[%c0_10, %c0_11] : memref<128x384xf32, #tpu.memory_space<vmem>>, vector<128x384xf32>
    %cst_12 = arith.constant dense<0.000000e+00> : vector<16x384xf32>
    %12 = tpu.matmul %10, %11, %cst_12 {dimension_numbers = #tpu.dot_dimension_numbers<[1], [0], [0], [1], [0, 0, 1, 1], [], []>} : vector<16x128xf32>, vector<128x384xf32>, vector<16x384xf32> -> vector<16x384xf32>
    %c0_13 = arith.constant 0 : index
    %c0_14 = arith.constant 0 : index
    %13 = vector.load %arg7[%c0_13, %c0_14] : memref<1x384xf32, #tpu.memory_space<vmem>>, vector<1x384xf32>
    %14 = vector.broadcast %13 : vector<1x384xf32> to vector<16x384xf32>
    %15 = arith.addf %12, %14 : vector<16x384xf32>
    %c0_15 = arith.constant 0 : index
    %c0_16 = arith.constant 0 : index
    %16 = vector.load %arg5[%c0_15, %c0_16] : memref<128x256xf32, #tpu.memory_space<vmem>>, vector<128x256xf32>
    %cst_17 = arith.constant dense<0.000000e+00> : vector<16x256xf32>
    %17 = tpu.matmul %5, %16, %cst_17 {dimension_numbers = #tpu.dot_dimension_numbers<[1], [0], [0], [1], [0, 0, 1, 1], [], []>} : vector<16x128xf32>, vector<128x256xf32>, vector<16x256xf32> -> vector<16x256xf32>
    %18 = vector.extract_strided_slice %15 {offsets = [0, 0], sizes = [16, 128], strides = [1, 1]} : vector<16x384xf32> to vector<16x128xf32>
    %19 = vector.extract_strided_slice %17 {offsets = [0, 0], sizes = [16, 128], strides = [1, 1]} : vector<16x256xf32> to vector<16x128xf32>
    %20 = arith.addf %18, %19 : vector<16x128xf32>
    %21 = arith.negf %20 : vector<16x128xf32>
    %22 = math.exp %21 : vector<16x128xf32>
    %cst_18 = arith.constant 1.000000e+00 : f32
    %23 = vector.broadcast %cst_18 : f32 to vector<16x128xf32>
    %24 = arith.addf %23, %22 : vector<16x128xf32>
    %25 = arith.divf %23, %24 : vector<16x128xf32>
    %26 = vector.extract_strided_slice %15 {offsets = [0, 128], sizes = [16, 128], strides = [1, 1]} : vector<16x384xf32> to vector<16x128xf32>
    %27 = vector.extract_strided_slice %17 {offsets = [0, 128], sizes = [16, 128], strides = [1, 1]} : vector<16x256xf32> to vector<16x128xf32>
    %28 = arith.addf %26, %27 : vector<16x128xf32>
    %29 = arith.negf %28 : vector<16x128xf32>
    %30 = math.exp %29 : vector<16x128xf32>
    %cst_19 = arith.constant 1.000000e+00 : f32
    %31 = vector.broadcast %cst_19 : f32 to vector<16x128xf32>
    %32 = arith.addf %31, %30 : vector<16x128xf32>
    %33 = arith.divf %31, %32 : vector<16x128xf32>
    %34 = vector.extract_strided_slice %15 {offsets = [0, 256], sizes = [16, 128], strides = [1, 1]} : vector<16x384xf32> to vector<16x128xf32>
    %35 = arith.mulf %33, %5 : vector<16x128xf32>
    %c0_20 = arith.constant 0 : index
    %c0_21 = arith.constant 0 : index
    %36 = vector.load %arg6[%c0_20, %c0_21] : memref<128x128xf32, #tpu.memory_space<vmem>>, vector<128x128xf32>
    %cst_22 = arith.constant dense<0.000000e+00> : vector<16x128xf32>
    %37 = tpu.matmul %35, %36, %cst_22 {dimension_numbers = #tpu.dot_dimension_numbers<[1], [0], [0], [1], [0, 0, 1, 1], [], []>} : vector<16x128xf32>, vector<128x128xf32>, vector<16x128xf32> -> vector<16x128xf32>
    %38 = arith.addf %34, %37 : vector<16x128xf32>
    %39 = math.tanh %38 : vector<16x128xf32>
    %40 = arith.mulf %39, %25 : vector<16x128xf32>
    %cst_23 = arith.constant 1.000000e+00 : f32
    %41 = vector.broadcast %cst_23 : f32 to vector<16x128xf32>
    %42 = arith.subf %41, %25 : vector<16x128xf32>
    %43 = arith.mulf %5, %42 : vector<16x128xf32>
    %44 = arith.addf %40, %43 : vector<16x128xf32>
    %c0_24 = arith.constant 0 : index
    %c0_25 = arith.constant 0 : index
    %45 = vector.load %arg8[%c0_24, %c0_25] : memref<16x128xf32, #tpu.memory_space<vmem>>, vector<16x128xf32>
    tpu.vector_store %arg8[%c0_24, %c0_25], %44 {strides = array<i32>} : memref<16x128xf32, #tpu.memory_space<vmem>>, vector<16x128xf32>,
    return
  }
  func.func @transform_0(%arg0: i32) -> (i32, i32) {
    %c0_i32 = arith.constant 0 : i32
    %c0_i32_0 = arith.constant 0 : i32
    return %arg0, %c0_i32 : i32, i32
  }
  func.func @transform_1(%arg0: i32) -> (i32, i32) {
    %c0_i32 = arith.constant 0 : i32
    %c0_i32_0 = arith.constant 0 : i32
    %c0_i32_1 = arith.constant 0 : i32
    return %c0_i32, %c0_i32_0 : i32, i32
  }
  func.func @transform_2(%arg0: i32) -> (i32, i32) {
    %c0_i32 = arith.constant 0 : i32
    %c0_i32_0 = arith.constant 0 : i32
    %c0_i32_1 = arith.constant 0 : i32
    return %c0_i32, %c0_i32_0 : i32, i32
  }
  func.func @transform_3(%arg0: i32) -> (i32, i32) {
    %c0_i32 = arith.constant 0 : i32
    %c0_i32_0 = arith.constant 0 : i32
    %c0_i32_1 = arith.constant 0 : i32
    return %c0_i32, %c0_i32_0 : i32, i32
  }
  func.func @transform_4(%arg0: i32) -> (i32, i32) {
    %c0_i32 = arith.constant 0 : i32
    %c0_i32_0 = arith.constant 0 : i32
    %c0_i32_1 = arith.constant 0 : i32
    return %c0_i32, %c0_i32_0 : i32, i32
  }
  func.func @transform_5(%arg0: i32) -> (i32, i32) {
    %c0_i32 = arith.constant 0 : i32
    %c0_i32_0 = arith.constant 0 : i32
    %c0_i32_1 = arith.constant 0 : i32
    return %c0_i32, %c0_i32_0 : i32, i32
  }
  func.func @transform_6(%arg0: i32) -> (i32, i32) {
    %c0_i32 = arith.constant 0 : i32
    %c0_i32_0 = arith.constant 0 : i32
    %c0_i32_1 = arith.constant 0 : i32
    return %c0_i32, %c0_i32_0 : i32, i32
  }
  func.func @transform_7(%arg0: i32) -> (i32, i32) {
    %c0_i32 = arith.constant 0 : i32
    %c0_i32_0 = arith.constant 0 : i32
    return %arg0, %c0_i32 : i32, i32
  }
}

</mosaic_0001>

<llo_original>
// kernel: tpu_custom_call.1
$region0: #{tpu_custom_call.1}
  #allocation0 [shape = 'u32[]', space=smem, size = 0x4, offset = 0x4, fixed_abs, tag = 'smem constant byte address 0x4 - core index']
  #allocation1 [shape = 'u32[144,128]{1,0:T(1,128)}', space=vmem, size = 0x12000, scoped, tag = 'internal scratch']
  %s0 = inlined_call_operand.vmem [shape: f32[16,16], index: 0, kind: input, shape index: {}]
  %s1 = inlined_call_operand.vmem [shape: f32[16,8], index: 1, kind: input, shape index: {}]
  %s2 = inlined_call_operand.vmem [shape: f32[8,128], index: 2, kind: input, shape index: {}]
  %s3 = inlined_call_operand.hbm [shape: f32[128,384], index: 3, kind: input, shape index: {}]
  %s4 = inlined_call_operand.hbm [shape: f32[128,256], index: 4, kind: input, shape index: {}]
  %s5 = inlined_call_operand.hbm [shape: f32[128,128], index: 5, kind: input, shape index: {}]
  %s6 = inlined_call_operand.vmem [shape: f32[1,384], index: 6, kind: input, shape index: {}]
  %s7 = inlined_call_operand.hbm [shape: f32[16,128], index: 7, kind: output, shape index: {}]
  %s8 = sld [smem:[#allocation0]]
  $region50: #{tpu_custom_call.1} parent=0
    _
  %s10 = ssub.s32 1, %s8
  %s11 = scalar_select 0, %s10, %s8
  $region1: #{tpu_custom_call.1} parent=0
    #allocation2 [shape = 'u8[196608]{0}', space=vmem, size = 0x30000, scoped, tag = 'input window, operand 3, single buffered']
    #allocation3 [shape = 's32[1]{0}', space=sflag, size = 0x4, scoped, tag = 'scoped memory for tpu_custom_call.1']
    #allocation4 [shape = 's32[1]{0}', space=sflag, size = 0x4, scoped, tag = 'scoped memory for tpu_custom_call.1']
    #allocation5 [shape = 'u8[131072]{0}', space=vmem, size = 0x20000, scoped, tag = 'input window, operand 4, single buffered']
    #allocation6 [shape = 's32[1]{0}', space=sflag, size = 0x4, scoped, tag = 'scoped memory for tpu_custom_call.1']
    #allocation7 [shape = 'u8[65536]{0}', space=vmem, size = 0x10000, scoped, tag = 'input window, operand 5, single buffered']
    #allocation8 [shape = 'u8[8192]{0}', space=vmem, size = 0x2000, scoped, tag = 'output window, operand 0, single buffered']
    %12 = vsyncpa [#allocation3], 0
    %13 = vsyncpa [#allocation6], 0
    %14 = vsyncpa [#allocation4], 0
    // Predicated region
    $region2: #{tpu_custom_call.1} parent=1 // pred_check
      _
    $region3: #{tpu_custom_call.1} parent=1 // pred_check_branch
      %16 = sbr.rel (0) target = $region5
    $region4: #{tpu_custom_call.1} parent=1 // pred_region
      _
    $region5: #{tpu_custom_call.1} parent=1 // pred_fallthru
      _
    // Predicated region
    $region6: #{tpu_custom_call.1} parent=1 // pred_check
      _
    $region7: #{tpu_custom_call.1} parent=1 // pred_check_branch
      %18 = sbr.rel (0) target = $region9
    $region8: #{tpu_custom_call.1} parent=1 // pred_region
      _
    $region9: #{tpu_custom_call.1} parent=1 // pred_fallthru
      _
    // Predicated region
    $region10: #{tpu_custom_call.1} parent=1 // pred_check
      _
    $region11: #{tpu_custom_call.1} parent=1 // pred_check_branch
      %20 = sbr.rel (0) target = $region13
    $region12: #{tpu_custom_call.1} parent=1 // pred_region
      _
    $region13: #{tpu_custom_call.1} parent=1 // pred_fallthru
      _
    // Predicated region
    $region14: #{tpu_custom_call.1} parent=1 // pred_check
      _
    $region15: #{tpu_custom_call.1} parent=1 // pred_check_branch
      %22 = sbr.rel (0) target = $region17
    $region16: #{tpu_custom_call.1} parent=1 // pred_region
      %s24 = ssub.s32 6144, 6144
      %25 = vsyncadd [#allocation3], %s24
      %s26 = sshll.u32 [#allocation2], 4
      %s27 = int_to_ptr.vmem [resolvable:$true] %s26
      %32 = dma.hbm_to_vmem [thread:$0]  %s3, 6144, %s27, [#allocation3], 384, 384, 24
    $region17: #{tpu_custom_call.1} parent=1 // pred_fallthru
      _
    // Predicated region
    $region18: #{tpu_custom_call.1} parent=1 // pred_check
      _
    $region19: #{tpu_custom_call.1} parent=1 // pred_check_branch
      %34 = sbr.rel (0) target = $region21
    $region20: #{tpu_custom_call.1} parent=1 // pred_region
      %s36 = ssub.s32 4096, 4096
      %37 = vsyncadd [#allocation6], %s36
      %s38 = sshll.u32 [#allocation5], 4
      %s39 = int_to_ptr.vmem [resolvable:$true] %s38
      %44 = dma.hbm_to_vmem [thread:$0]  %s4, 4096, %s39, [#allocation6], 256, 256, 16
    $region21: #{tpu_custom_call.1} parent=1 // pred_fallthru
      _
    // Predicated region
    $region22: #{tpu_custom_call.1} parent=1 // pred_check
      _
    $region23: #{tpu_custom_call.1} parent=1 // pred_check_branch
      %46 = sbr.rel (0) target = $region25
    $region24: #{tpu_custom_call.1} parent=1 // pred_region
      %s48 = ssub.s32 2048, 2048
      %49 = vsyncadd [#allocation6], %s48
      %s50 = sshll.u32 [#allocation7], 4
      %s51 = int_to_ptr.vmem [resolvable:$true] %s50
      %56 = dma.hbm_to_vmem [thread:$0]  %s5, 2048, %s51, [#allocation6], 128, 128, 8
    $region25: #{tpu_custom_call.1} parent=1 // pred_fallthru
      _
    // Predicated region
    $region26: #{tpu_custom_call.1} parent=1 // pred_check
      _
    $region27: #{tpu_custom_call.1} parent=1 // pred_check_branch
      %58 = sbr.rel (0) target = $region29
    $region28: #{tpu_custom_call.1} parent=1 // pred_region
      _
    $region29: #{tpu_custom_call.1} parent=1 // pred_fallthru
      _
    // Predicated region
    $region30: #{tpu_custom_call.1} parent=1 // pred_check
      _
    $region31: #{tpu_custom_call.1} parent=1 // pred_check_branch
      %60 = sbr.rel (0) target = $region33
    $region32: #{tpu_custom_call.1} parent=1 // pred_region
      %61 = dma.done [#allocation3], 6144
    $region33: #{tpu_custom_call.1} parent=1 // pred_fallthru
      _
    // Predicated region
    $region34: #{tpu_custom_call.1} parent=1 // pred_check
      _
    $region35: #{tpu_custom_call.1} parent=1 // pred_check_branch
      %63 = sbr.rel (0) target = $region37
    $region36: #{tpu_custom_call.1} parent=1 // pred_region
      %64 = dma.done [#allocation6], 4096
    $region37: #{tpu_custom_call.1} parent=1 // pred_fallthru
      _
    // Predicated region
    $region38: #{tpu_custom_call.1} parent=1 // pred_check
      _
    $region39: #{tpu_custom_call.1} parent=1 // pred_check_branch
      %66 = sbr.rel (0) target = $region41
    $region40: #{tpu_custom_call.1} parent=1 // pred_region
      %67 = dma.done [#allocation6], 2048
    $region41: #{tpu_custom_call.1} parent=1 // pred_fallthru
      _
    %s68 = smul.u32 0, 16
    %s69 = scalar_lea.vmem %s1, %s68
    %v70 = vld [vmem:[%s69] sm:$0xff]
    %v71 = vld [vmem:[%s69 + $0x8] sm:$0xff]
    %v72 = vld [vmem:[%s2] sm:$0xff]
    %vm73 = vcmask 64512
    %v75 = vsel %vm73, %v70, 0
    %v78 = vsel %vm73, %v71, 0
    %80 = vmatprep.subr.mxu0 0.0
    %81 = vmatpush1.msra.mxu0 0.0
    %82 = vmatprep.subr.mxu0 0.0
    %83 = vmatpush1.msra.mxu0 0.0
    %84 = vmatprep.subr.mxu0 0.0
    %85 = vmatpush1.msra.mxu0 0.0
    %86 = vmatprep.subr.mxu0 0.0
    %87 = vmatpush1.msra.mxu0 0.0
    %88 = vmatprep.subr.mxu0 0.0
    %89 = vmatpush1.msra.mxu0 0.0
    %90 = vmatprep.subr.mxu0 0.0
    %91 = vmatpush1.msra.mxu0 0.0
    %92 = vmatprep.subr.mxu0 0.0
    %93 = vmatpush1.msra.mxu0 0.0
    %94 = vmatprep.subr.mxu0 0.0
    %95 = vmatpush1.msra.mxu0 0.0
    %96 = vmatprep.subr.mxu0 0.0
    %97 = vmatpush1.msra.mxu0 0.0
    %98 = vmatprep.subr.mxu0 0.0
    %99 = vmatpush1.msra.mxu0 0.0
    %100 = vmatprep.subr.mxu0 0.0
    %101 = vmatpush1.msra.mxu0 0.0
    %102 = vmatprep.subr.mxu0 0.0
    %103 = vmatpush1.msra.mxu0 0.0
    %104 = vmatprep.subr.mxu0 0.0
    %105 = vmatpush1.msra.mxu0 0.0
    %106 = vmatprep.subr.mxu0 0.0
    %107 = vmatpush1.msra.mxu0 0.0
    %108 = vmatprep.subr.mxu0 0.0
    %109 = vmatpush1.msra.mxu0 0.0
    %110 = vmatprep.subr.mxu0 0.0
    %111 = vmatpush1.msra.mxu0 %v72
    %112 = vmatprep.subr.mxu0 0.0
    %113 = vmatpush2.msra.mxu0 0.0
    %114 = vmatprep.subr.mxu0 0.0
    %115 = vmatpush2.msra.mxu0 0.0
    %116 = vmatprep.subr.mxu0 0.0
    %117 = vmatpush2.msra.mxu0 0.0
    %118 = vmatprep.subr.mxu0 0.0
    %119 = vmatpush2.msra.mxu0 0.0
    %120 = vmatprep.subr.mxu0 0.0
    %121 = vmatpush2.msra.mxu0 0.0
    %122 = vmatprep.subr.mxu0 0.0
    %123 = vmatpush2.msra.mxu0 0.0
    %124 = vmatprep.subr.mxu0 0.0
    %125 = vmatpush2.msra.mxu0 0.0
    %126 = vmatprep.subr.mxu0 0.0
    %127 = vmatpush2.msra.mxu0 0.0
    %128 = vmatprep.subr.mxu0 0.0
    %129 = vmatpush2.msra.mxu0 0.0
    %130 = vmatprep.subr.mxu0 0.0
    %131 = vmatpush2.msra.mxu0 0.0
    %132 = vmatprep.subr.mxu0 0.0
    %133 = vmatpush2.msra.mxu0 0.0
    %134 = vmatprep.subr.mxu0 0.0
    %135 = vmatpush2.msra.mxu0 0.0
    %136 = vmatprep.subr.mxu0 0.0
    %137 = vmatpush2.msra.mxu0 0.0
    %138 = vmatprep.subr.mxu0 0.0
    %139 = vmatpush2.msra.mxu0 0.0
    %140 = vmatprep.subr.mxu0 0.0
    %141 = vmatpush2.msra.mxu0 0.0
    %142 = vmatprep.subr.mxu0 0.0
    %143 = vmatpush2.msra.mxu0 0.0
    %144 = vmatprep.mubr.f32.mxu0 0.0
    %145 = vmatmul.mubr.f32.gmra.mxu0 %v75
    %v146 = vpop.f32.mrf.mxu0
    %v147 = vadd.f32 0.0, %v146
    %v148 = vpop.f32.mrf.mxu0
    %149 = vmatprep.mubr.f32.mxu0 0.0
    %150 = vmatmul.mubr.f32.gmra.mxu0 %v78
    %v151 = vpop.f32.mrf.mxu0
    %v152 = vadd.f32 0.0, %v151
    %v153 = vpop.f32.mrf.mxu0
    %154 = vdwg.mxu0
    %v155 = vld [vmem:[%s0] sm:$0xff]
    %v156 = vld [vmem:[%s0 + $0x8] sm:$0xff]
    %v157 = vld [vmem:[%s1] sm:$0xff]
    %v158 = vld [vmem:[%s1 + $0x8] sm:$0xff]
    %vm159 = vcmask 130048
    %v161 = vsel %vm159, %v155, 0
    %v164 = vsel %vm159, %v156, 0
    %166 = vmatprep.subr.mxu0 0.0
    %167 = vmatpush1.msra.mxu0 0.0
    %168 = vmatprep.subr.mxu0 0.0
    %169 = vmatpush1.msra.mxu0 0.0
    %170 = vmatprep.subr.mxu0 0.0
    %171 = vmatpush1.msra.mxu0 0.0
    %172 = vmatprep.subr.mxu0 0.0
    %173 = vmatpush1.msra.mxu0 0.0
    %174 = vmatprep.subr.mxu0 0.0
    %175 = vmatpush1.msra.mxu0 0.0
    %176 = vmatprep.subr.mxu0 0.0
    %177 = vmatpush1.msra.mxu0 0.0
    %178 = vmatprep.subr.mxu0 0.0
    %179 = vmatpush1.msra.mxu0 0.0
    %180 = vmatprep.subr.mxu0 0.0
    %181 = vmatpush1.msra.mxu0 0.0
    %182 = vmatprep.subr.mxu0 0.0
    %183 = vmatpush1.msra.mxu0 0.0
    %184 = vmatprep.subr.mxu0 0.0
    %185 = vmatpush1.msra.mxu0 0.0
    %186 = vmatprep.subr.mxu0 0.0
    %187 = vmatpush1.msra.mxu0 0.0
    %188 = vmatprep.subr.mxu0 0.0
    %189 = vmatpush1.msra.mxu0 0.0
    %190 = vmatprep.subr.mxu0 0.0
    %191 = vmatpush1.msra.mxu0 0.0
    %192 = vmatprep.subr.mxu0 0.0
    %193 = vmatpush1.msra.mxu0 0.0
    %194 = vmatprep.subr.mxu0 0.0
    %195 = vmatpush1.msra.mxu0 %v158
    %196 = vmatprep.subr.mxu0 0.0
    %197 = vmatpush1.msra.mxu0 %v157
    %198 = vmatprep.subr.mxu0 0.0
    %199 = vmatpush2.msra.mxu0 0.0
    %200 = vmatprep.subr.mxu0 0.0
    %201 = vmatpush2.msra.mxu0 0.0
    %202 = vmatprep.subr.mxu0 0.0
    %203 = vmatpush2.msra.mxu0 0.0
    %204 = vmatprep.subr.mxu0 0.0
    %205 = vmatpush2.msra.mxu0 0.0
    %206 = vmatprep.subr.mxu0 0.0
    %207 = vmatpush2.msra.mxu0 0.0
    %208 = vmatprep.subr.mxu0 0.0
    %209 = vmatpush2.msra.mxu0 0.0
    %210 = vmatprep.subr.mxu0 0.0
    %211 = vmatpush2.msra.mxu0 0.0
    %212 = vmatprep.subr.mxu0 0.0
    %213 = vmatpush2.msra.mxu0 0.0
    %214 = vmatprep.subr.mxu0 0.0
    %215 = vmatpush2.msra.mxu0 0.0
    %216 = vmatprep.subr.mxu0 0.0
    %217 = vmatpush2.msra.mxu0 0.0
    %218 = vmatprep.subr.mxu0 0.0
    %219 = vmatpush2.msra.mxu0 0.0
    %220 = vmatprep.subr.mxu0 0.0
    %221 = vmatpush2.msra.mxu0 0.0
    %222 = vmatprep.subr.mxu0 0.0
    %223 = vmatpush2.msra.mxu0 0.0
    %224 = vmatprep.subr.mxu0 0.0
    %225 = vmatpush2.msra.mxu0 0.0
    %226 = vmatprep.subr.mxu0 0.0
    %227 = vmatpush2.msra.mxu0 0.0
    %228 = vmatprep.subr.mxu0 0.0
    %229 = vmatpush2.msra.mxu0 0.0
    %230 = vmatprep.mubr.f32.mxu0 0.0
    %231 = vmatmul.mubr.f32.gmra.mxu0 %v161
    %v232 = vpop.f32.mrf.mxu0
    %v233 = vadd.f32 0.0, %v232
    %v234 = vpop.f32.mrf.mxu0
    %235 = vmatprep.mubr.f32.mxu0 0.0
    %236 = vmatmul.mubr.f32.gmra.mxu0 %v164
    %v237 = vpop.f32.mrf.mxu0
    %v238 = vadd.f32 0.0, %v237
    %v239 = vpop.f32.mrf.mxu0
    %240 = vdwg.mxu0
    %v242 = vsel %vm73, %v233, 0
    %v245 = vsel %vm73, %v238, 0
    %247 = vmatprep.subr.mxu0 0.0
    %248 = vmatpush1.msra.mxu0 0.0
    %249 = vmatprep.subr.mxu0 0.0
    %250 = vmatpush1.msra.mxu0 0.0
    %251 = vmatprep.subr.mxu0 0.0
    %252 = vmatpush1.msra.mxu0 0.0
    %253 = vmatprep.subr.mxu0 0.0
    %254 = vmatpush1.msra.mxu0 0.0
    %255 = vmatprep.subr.mxu0 0.0
    %256 = vmatpush1.msra.mxu0 0.0
    %257 = vmatprep.subr.mxu0 0.0
    %258 = vmatpush1.msra.mxu0 0.0
    %259 = vmatprep.subr.mxu0 0.0
    %260 = vmatpush1.msra.mxu0 0.0
    %261 = vmatprep.subr.mxu0 0.0
    %262 = vmatpush1.msra.mxu0 0.0
    %263 = vmatprep.subr.mxu0 0.0
    %264 = vmatpush1.msra.mxu0 0.0
    %265 = vmatprep.subr.mxu0 0.0
    %266 = vmatpush1.msra.mxu0 0.0
    %267 = vmatprep.subr.mxu0 0.0
    %268 = vmatpush1.msra.mxu0 0.0
    %269 = vmatprep.subr.mxu0 0.0
    %270 = vmatpush1.msra.mxu0 0.0
    %271 = vmatprep.subr.mxu0 0.0
    %272 = vmatpush1.msra.mxu0 0.0
    %273 = vmatprep.subr.mxu0 0.0
    %274 = vmatpush1.msra.mxu0 0.0
    %275 = vmatprep.subr.mxu0 0.0
    %276 = vmatpush1.msra.mxu0 0.0
    %277 = vmatprep.subr.mxu0 0.0
    %278 = vmatpush1.msra.mxu0 %v72
    %279 = vmatprep.subr.mxu0 0.0
    %280 = vmatpush2.msra.mxu0 0.0
    %281 = vmatprep.subr.mxu0 0.0
    %282 = vmatpush2.msra.mxu0 0.0
    %283 = vmatprep.subr.mxu0 0.0
    %284 = vmatpush2.msra.mxu0 0.0
    %285 = vmatprep.subr.mxu0 0.0
    %286 = vmatpush2.msra.mxu0 0.0
    %287 = vmatprep.subr.mxu0 0.0
    %288 = vmatpush2.msra.mxu0 0.0
    %289 = vmatprep.subr.mxu0 0.0
    %290 = vmatpush2.msra.mxu0 0.0
    %291 = vmatprep.subr.mxu0 0.0
    %292 = vmatpush2.msra.mxu0 0.0
    %293 = vmatprep.subr.mxu0 0.0
    %294 = vmatpush2.msra.mxu0 0.0
    %295 = vmatprep.subr.mxu0 0.0
    %296 = vmatpush2.msra.mxu0 0.0
    %297 = vmatprep.subr.mxu0 0.0
    %298 = vmatpush2.msra.mxu0 0.0
    %299 = vmatprep.subr.mxu0 0.0
    %300 = vmatpush2.msra.mxu0 0.0
    %301 = vmatprep.subr.mxu0 0.0
    %302 = vmatpush2.msra.mxu0 0.0
    %303 = vmatprep.subr.mxu0 0.0
    %304 = vmatpush2.msra.mxu0 0.0
    %305 = vmatprep.subr.mxu0 0.0
    %306 = vmatpush2.msra.mxu0 0.0
    %307 = vmatprep.subr.mxu0 0.0
    %308 = vmatpush2.msra.mxu0 0.0
    %309 = vmatprep.subr.mxu0 0.0
    %310 = vmatpush2.msra.mxu0 0.0
    %311 = vmatprep.mubr.f32.mxu0 0.0
    %312 = vmatmul.mubr.f32.gmra.mxu0 %v242
    %v313 = vpop.f32.mrf.mxu0
    %v314 = vadd.f32 0.0, %v313
    %v315 = vpop.f32.mrf.mxu0
    %316 = vmatprep.mubr.f32.mxu0 0.0
    %317 = vmatmul.mubr.f32.gmra.mxu0 %v245
    %v318 = vpop.f32.mrf.mxu0
    %v319 = vadd.f32 0.0, %v318
    %v320 = vpop.f32.mrf.mxu0
    %321 = vdwg.mxu0
    %v322 = vld [vmem:[#allocation2] sm:$0xff]
    %v323 = vld [vmem:[#allocation2 + $0x8] sm:$0xff]
    %v324 = vld [vmem:[#allocation2 + $0x10] sm:$0xff]
    %v325 = vld [vmem:[#allocation2 + $0x18] sm:$0xff]
    %v326 = vld [vmem:[#allocation2 + $0x20] sm:$0xff]
    %v327 = vld [vmem:[#allocation2 + $0x28] sm:$0xff]
    %v328 = vld [vmem:[#allocation2 + $0x30] sm:$0xff]
    %v329 = vld [vmem:[#allocation2 + $0x38] sm:$0xff]
    %v330 = vld [vmem:[#allocation2 + $0x40] sm:$0xff]
    %v331 = vld [vmem:[#allocation2 + $0x48] sm:$0xff]
    %v332 = vld [vmem:[#allocation2 + $0x50] sm:$0xff]
    %v333 = vld [vmem:[#allocation2 + $0x58] sm:$0xff]
    %v334 = vld [vmem:[#allocation2 + $0x60] sm:$0xff]
    %v335 = vld [vmem:[#allocation2 + $0x68] sm:$0xff]
    %v336 = vld [vmem:[#allocation2 + $0x70] sm:$0xff]
    %v337 = vld [vmem:[#allocation2 + $0x78] sm:$0xff]
    %v338 = vld [vmem:[#allocation2 + $0x80] sm:$0xff]
    %v339 = vld [vmem:[#allocation2 + $0x88] sm:$0xff]
    %v340 = vld [vmem:[#allocation2 + $0x90] sm:$0xff]
    %v341 = vld [vmem:[#allocation2 + $0x98] sm:$0xff]
    %v342 = vld [vmem:[#allocation2 + $0xa0] sm:$0xff]
    %v343 = vld [vmem:[#allocation2 + $0xa8] sm:$0xff]
    %v344 = vld [vmem:[#allocation2 + $0xb0] sm:$0xff]
    %v345 = vld [vmem:[#allocation2 + $0xb8] sm:$0xff]
    %v346 = vld [vmem:[#allocation2 + $0xc0] sm:$0xff]
    %v347 = vld [vmem:[#allocation2 + $0xc8] sm:$0xff]
    %v348 = vld [vmem:[#allocation2 + $0xd0] sm:$0xff]
    %v349 = vld [vmem:[#allocation2 + $0xd8] sm:$0xff]
    %v350 = vld [vmem:[#allocation2 + $0xe0] sm:$0xff]
    %v351 = vld [vmem:[#allocation2 + $0xe8] sm:$0xff]
    %v352 = vld [vmem:[#allocation2 + $0xf0] sm:$0xff]
    %v353 = vld [vmem:[#allocation2 + $0xf8] sm:$0xff]
    %v354 = vld [vmem:[#allocation2 + $0x100] sm:$0xff]
    %v355 = vld [vmem:[#allocation2 + $0x108] sm:$0xff]
    %v356 = vld [vmem:[#allocation2 + $0x110] sm:$0xff]
    %v357 = vld [vmem:[#allocation2 + $0x118] sm:$0xff]
    %v358 = vld [vmem:[#allocation2 + $0x120] sm:$0xff]
    %v359 = vld [vmem:[#allocation2 + $0x128] sm:$0xff]
    %v360 = vld [vmem:[#allocation2 + $0x130] sm:$0xff]
    %v361 = vld [vmem:[#allocation2 + $0x138] sm:$0xff]
    %v362 = vld [vmem:[#allocation2 + $0x140] sm:$0xff]
    %v363 = vld [vmem:[#allocation2 + $0x148] sm:$0xff]
    %v364 = vld [vmem:[#allocation2 + $0x150] sm:$0xff]
    %v365 = vld [vmem:[#allocation2 + $0x158] sm:$0xff]
    %v366 = vld [vmem:[#allocation2 + $0x160] sm:$0xff]
    %v367 = vld [vmem:[#allocation2 + $0x168] sm:$0xff]
    %v368 = vld [vmem:[#allocation2 + $0x170] sm:$0xff]
    %v369 = vld [vmem:[#allocation2 + $0x178] sm:$0xff]
    %v370 = vld [vmem:[%s6] sm:$0x7]
    %v372 = vlaneseq
    %v373 = vshrl.u32 %v372, 7
    %v374 = vsub.s32 0, %v373
    %v375 = vrot.slane %v370, %v374
    %v376 = vlaneseq
    %v377 = vshrl.u32 %v376, 7
    %v378 = vsub.s32 1, %v377
    %v379 = vrot.slane %v370, %v378
    %v380 = vlaneseq
    %v381 = vshrl.u32 %v380, 7
    %v382 = vsub.s32 2, %v381
    %v383 = vrot.slane %v370, %v382
    %387 = vmatprep.subr.mxu0 %v368
    %388 = vmatpush1.msra.mxu0 %v367
    %389 = vmatprep.subr.mxu0 %v365
    %390 = vmatpush1.msra.mxu0 %v364
    %391 = vmatprep.subr.mxu0 %v362
    %392 = vmatpush1.msra.mxu0 %v361
    %393 = vmatprep.subr.mxu0 %v359
    %394 = vmatpush1.msra.mxu0 %v358
    %395 = vmatprep.subr.mxu0 %v356
    %396 = vmatpush1.msra.mxu0 %v355
    %397 = vmatprep.subr.mxu0 %v353
    %398 = vmatpush1.msra.mxu0 %v352
    %399 = vmatprep.subr.mxu0 %v350
    %400 = vmatpush1.msra.mxu0 %v349
    %401 = vmatprep.subr.mxu0 %v347
    %402 = vmatpush1.msra.mxu0 %v346
    %403 = vmatprep.subr.mxu0 %v344
    %404 = vmatpush1.msra.mxu0 %v343
    %405 = vmatprep.subr.mxu0 %v341
    %406 = vmatpush1.msra.mxu0 %v340
    %407 = vmatprep.subr.mxu0 %v338
    %408 = vmatpush1.msra.mxu0 %v337
    %409 = vmatprep.subr.mxu0 %v335
    %410 = vmatpush1.msra.mxu0 %v334
    %411 = vmatprep.subr.mxu0 %v332
    %412 = vmatpush1.msra.mxu0 %v331
    %413 = vmatprep.subr.mxu0 %v329
    %414 = vmatpush1.msra.mxu0 %v328
    %415 = vmatprep.subr.mxu0 %v326
    %416 = vmatpush1.msra.mxu0 %v325
    %417 = vmatprep.subr.mxu0 %v323
    %418 = vmatpush1.msra.mxu0 %v322
    %419 = vmatprep.subr.mxu0 0.0
    %420 = vmatpush2.msra.mxu0 0.0
    %421 = vmatprep.subr.mxu0 0.0
    %422 = vmatpush2.msra.mxu0 0.0
    %423 = vmatprep.subr.mxu0 0.0
    %424 = vmatpush2.msra.mxu0 0.0
    %425 = vmatprep.subr.mxu0 0.0
    %426 = vmatpush2.msra.mxu0 0.0
    %427 = vmatprep.subr.mxu0 0.0
    %428 = vmatpush2.msra.mxu0 0.0
    %429 = vmatprep.subr.mxu0 0.0
    %430 = vmatpush2.msra.mxu0 0.0
    %431 = vmatprep.subr.mxu0 0.0
    %432 = vmatpush2.msra.mxu0 0.0
    %433 = vmatprep.subr.mxu0 0.0
    %434 = vmatpush2.msra.mxu0 0.0
    %435 = vmatprep.subr.mxu0 0.0
    %436 = vmatpush2.msra.mxu0 0.0
    %437 = vmatprep.subr.mxu0 0.0
    %438 = vmatpush2.msra.mxu0 0.0
    %439 = vmatprep.subr.mxu0 0.0
    %440 = vmatpush2.msra.mxu0 0.0
    %441 = vmatprep.subr.mxu0 0.0
    %442 = vmatpush2.msra.mxu0 0.0
    %443 = vmatprep.subr.mxu0 0.0
    %444 = vmatpush2.msra.mxu0 0.0
    %445 = vmatprep.subr.mxu0 0.0
    %446 = vmatpush2.msra.mxu0 0.0
    %447 = vmatprep.subr.mxu0 0.0
    %448 = vmatpush2.msra.mxu0 0.0
    %449 = vmatprep.subr.mxu0 0.0
    %450 = vmatpush2.msra.mxu0 0.0
    %451 = vmatprep.mubr.f32.mxu0 0.0
    %452 = vmatmul.mubr.f32.gmra.mxu0 %v314
    %v453 = vpop.f32.mrf.mxu0
    %v454 = vadd.f32 %v375, %v453
    %v455 = vpop.f32.mrf.mxu0
    %v456 = vadd.f32 %v379, %v455
    %457 = vmatprep.mubr.f32.mxu0 0.0
    %458 = vmatmul.mubr.f32.gmra.mxu0 %v319
    %v459 = vpop.f32.mrf.mxu0
    %v460 = vadd.f32 %v375, %v459
    %v461 = vpop.f32.mrf.mxu0
    %v462 = vadd.f32 %v379, %v461
    %463 = vdwg.mxu0
    %464 = vmatprep.subr.mxu0 0.0
    %465 = vmatpush1.msra.mxu0 %v369
    %466 = vmatprep.subr.mxu0 0.0
    %467 = vmatpush1.msra.mxu0 %v366
    %468 = vmatprep.subr.mxu0 0.0
    %469 = vmatpush1.msra.mxu0 %v363
    %470 = vmatprep.subr.mxu0 0.0
    %471 = vmatpush1.msra.mxu0 %v360
    %472 = vmatprep.subr.mxu0 0.0
    %473 = vmatpush1.msra.mxu0 %v357
    %474 = vmatprep.subr.mxu0 0.0
    %475 = vmatpush1.msra.mxu0 %v354
    %476 = vmatprep.subr.mxu0 0.0
    %477 = vmatpush1.msra.mxu0 %v351
    %478 = vmatprep.subr.mxu0 0.0
    %479 = vmatpush1.msra.mxu0 %v348
    %480 = vmatprep.subr.mxu0 0.0
    %481 = vmatpush1.msra.mxu0 %v345
    %482 = vmatprep.subr.mxu0 0.0
    %483 = vmatpush1.msra.mxu0 %v342
    %484 = vmatprep.subr.mxu0 0.0
    %485 = vmatpush1.msra.mxu0 %v339
    %486 = vmatprep.subr.mxu0 0.0
    %487 = vmatpush1.msra.mxu0 %v336
    %488 = vmatprep.subr.mxu0 0.0
    %489 = vmatpush1.msra.mxu0 %v333
    %490 = vmatprep.subr.mxu0 0.0
    %491 = vmatpush1.msra.mxu0 %v330
    %492 = vmatprep.subr.mxu0 0.0
    %493 = vmatpush1.msra.mxu0 %v327
    %494 = vmatprep.subr.mxu0 0.0
    %495 = vmatpush1.msra.mxu0 %v324
    %496 = vmatprep.subr.mxu0 0.0
    %497 = vmatpush2.msra.mxu0 0.0
    %498 = vmatprep.subr.mxu0 0.0
    %499 = vmatpush2.msra.mxu0 0.0
    %500 = vmatprep.subr.mxu0 0.0
    %501 = vmatpush2.msra.mxu0 0.0
    %502 = vmatprep.subr.mxu0 0.0
    %503 = vmatpush2.msra.mxu0 0.0
    %504 = vmatprep.subr.mxu0 0.0
    %505 = vmatpush2.msra.mxu0 0.0
    %506 = vmatprep.subr.mxu0 0.0
    %507 = vmatpush2.msra.mxu0 0.0
    %508 = vmatprep.subr.mxu0 0.0
    %509 = vmatpush2.msra.mxu0 0.0
    %510 = vmatprep.subr.mxu0 0.0
    %511 = vmatpush2.msra.mxu0 0.0
    %512 = vmatprep.subr.mxu0 0.0
    %513 = vmatpush2.msra.mxu0 0.0
    %514 = vmatprep.subr.mxu0 0.0
    %515 = vmatpush2.msra.mxu0 0.0
    %516 = vmatprep.subr.mxu0 0.0
    %517 = vmatpush2.msra.mxu0 0.0
    %518 = vmatprep.subr.mxu0 0.0
    %519 = vmatpush2.msra.mxu0 0.0
    %520 = vmatprep.subr.mxu0 0.0
    %521 = vmatpush2.msra.mxu0 0.0
    %522 = vmatprep.subr.mxu0 0.0
    %523 = vmatpush2.msra.mxu0 0.0
    %524 = vmatprep.subr.mxu0 0.0
    %525 = vmatpush2.msra.mxu0 0.0
    %526 = vmatprep.subr.mxu0 0.0
    %527 = vmatpush2.msra.mxu0 0.0
    %528 = vmatprep.mubr.f32.mxu0 0.0
    %529 = vmatmul.mubr.f32.gmra.mxu0 %v314
    %v530 = vpop.f32.mrf.mxu0
    %v531 = vadd.f32 %v383, %v530
    %v532 = vpop.f32.mrf.mxu0
    %533 = vmatprep.mubr.f32.mxu0 0.0
    %534 = vmatmul.mubr.f32.gmra.mxu0 %v319
    %v535 = vpop.f32.mrf.mxu0
    %v536 = vadd.f32 %v383, %v535
    %v537 = vpop.f32.mrf.mxu0
    %538 = vdwg.mxu0
    %v539 = vld [vmem:[#allocation5] sm:$0xff]
    %v540 = vld [vmem:[#allocation5 + $0x8] sm:$0xff]
    %v541 = vld [vmem:[#allocation5 + $0x10] sm:$0xff]
    %v542 = vld [vmem:[#allocation5 + $0x18] sm:$0xff]
    %v543 = vld [vmem:[#allocation5 + $0x20] sm:$0xff]
    %v544 = vld [vmem:[#allocation5 + $0x28] sm:$0xff]
    %v545 = vld [vmem:[#allocation5 + $0x30] sm:$0xff]
    %v546 = vld [vmem:[#allocation5 + $0x38] sm:$0xff]
    %v547 = vld [vmem:[#allocation5 + $0x40] sm:$0xff]
    %v548 = vld [vmem:[#allocation5 + $0x48] sm:$0xff]
    %v549 = vld [vmem:[#allocation5 + $0x50] sm:$0xff]
    %v550 = vld [vmem:[#allocation5 + $0x58] sm:$0xff]
    %v551 = vld [vmem:[#allocation5 + $0x60] sm:$0xff]
    %v552 = vld [vmem:[#allocation5 + $0x68] sm:$0xff]
    %v553 = vld [vmem:[#allocation5 + $0x70] sm:$0xff]
    %v554 = vld [vmem:[#allocation5 + $0x78] sm:$0xff]
    %v555 = vld [vmem:[#allocation5 + $0x80] sm:$0xff]
    %v556 = vld [vmem:[#allocation5 + $0x88] sm:$0xff]
    %v557 = vld [vmem:[#allocation5 + $0x90] sm:$0xff]
    %v558 = vld [vmem:[#allocation5 + $0x98] sm:$0xff]
    %v559 = vld [vmem:[#allocation5 + $0xa0] sm:$0xff]
    %v560 = vld [vmem:[#allocation5 + $0xa8] sm:$0xff]
    %v561 = vld [vmem:[#allocation5 + $0xb0] sm:$0xff]
    %v562 = vld [vmem:[#allocation5 + $0xb8] sm:$0xff]
    %v563 = vld [vmem:[#allocation5 + $0xc0] sm:$0xff]
    %v564 = vld [vmem:[#allocation5 + $0xc8] sm:$0xff]
    %v565 = vld [vmem:[#allocation5 + $0xd0] sm:$0xff]
    %v566 = vld [vmem:[#allocation5 + $0xd8] sm:$0xff]
    %v567 = vld [vmem:[#allocation5 + $0xe0] sm:$0xff]
    %v568 = vld [vmem:[#allocation5 + $0xe8] sm:$0xff]
    %v569 = vld [vmem:[#allocation5 + $0xf0] sm:$0xff]
    %v570 = vld [vmem:[#allocation5 + $0xf8] sm:$0xff]
    %571 = vmatprep.subr.mxu0 %v570
    %572 = vmatpush1.msra.mxu0 %v569
    %573 = vmatprep.subr.mxu0 %v568
    %574 = vmatpush1.msra.mxu0 %v567
    %575 = vmatprep.subr.mxu0 %v566
    %576 = vmatpush1.msra.mxu0 %v565
    %577 = vmatprep.subr.mxu0 %v564
    %578 = vmatpush1.msra.mxu0 %v563
    %579 = vmatprep.subr.mxu0 %v562
    %580 = vmatpush1.msra.mxu0 %v561
    %581 = vmatprep.subr.mxu0 %v560
    %582 = vmatpush1.msra.mxu0 %v559
    %583 = vmatprep.subr.mxu0 %v558
    %584 = vmatpush1.msra.mxu0 %v557
    %585 = vmatprep.subr.mxu0 %v556
    %586 = vmatpush1.msra.mxu0 %v555
    %587 = vmatprep.subr.mxu0 %v554
    %588 = vmatpush1.msra.mxu0 %v553
    %589 = vmatprep.subr.mxu0 %v552
    %590 = vmatpush1.msra.mxu0 %v551
    %591 = vmatprep.subr.mxu0 %v550
    %592 = vmatpush1.msra.mxu0 %v549
    %593 = vmatprep.subr.mxu0 %v548
    %594 = vmatpush1.msra.mxu0 %v547
    %595 = vmatprep.subr.mxu0 %v546
    %596 = vmatpush1.msra.mxu0 %v545
    %597 = vmatprep.subr.mxu0 %v544
    %598 = vmatpush1.msra.mxu0 %v543
    %599 = vmatprep.subr.mxu0 %v542
    %600 = vmatpush1.msra.mxu0 %v541
    %601 = vmatprep.subr.mxu0 %v540
    %602 = vmatpush1.msra.mxu0 %v539
    %603 = vmatprep.subr.mxu0 0.0
    %604 = vmatpush2.msra.mxu0 0.0
    %605 = vmatprep.subr.mxu0 0.0
    %606 = vmatpush2.msra.mxu0 0.0
    %607 = vmatprep.subr.mxu0 0.0
    %608 = vmatpush2.msra.mxu0 0.0
    %609 = vmatprep.subr.mxu0 0.0
    %610 = vmatpush2.msra.mxu0 0.0
    %611 = vmatprep.subr.mxu0 0.0
    %612 = vmatpush2.msra.mxu0 0.0
    %613 = vmatprep.subr.mxu0 0.0
    %614 = vmatpush2.msra.mxu0 0.0
    %615 = vmatprep.subr.mxu0 0.0
    %616 = vmatpush2.msra.mxu0 0.0
    %617 = vmatprep.subr.mxu0 0.0
    %618 = vmatpush2.msra.mxu0 0.0
    %619 = vmatprep.subr.mxu0 0.0
    %620 = vmatpush2.msra.mxu0 0.0
    %621 = vmatprep.subr.mxu0 0.0
    %622 = vmatpush2.msra.mxu0 0.0
    %623 = vmatprep.subr.mxu0 0.0
    %624 = vmatpush2.msra.mxu0 0.0
    %625 = vmatprep.subr.mxu0 0.0
    %626 = vmatpush2.msra.mxu0 0.0
    %627 = vmatprep.subr.mxu0 0.0
    %628 = vmatpush2.msra.mxu0 0.0
    %629 = vmatprep.subr.mxu0 0.0
    %630 = vmatpush2.msra.mxu0 0.0
    %631 = vmatprep.subr.mxu0 0.0
    %632 = vmatpush2.msra.mxu0 0.0
    %633 = vmatprep.subr.mxu0 0.0
    %634 = vmatpush2.msra.mxu0 0.0
    %635 = vmatprep.mubr.f32.mxu0 0.0
    %636 = vmatmul.mubr.f32.gmra.mxu0 %v147
    %v637 = vpop.f32.mrf.mxu0
    %v638 = vadd.f32 0.0, %v637
    %v639 = vpop.f32.mrf.mxu0
    %v640 = vadd.f32 0.0, %v639
    %641 = vmatprep.mubr.f32.mxu0 0.0
    %642 = vmatmul.mubr.f32.gmra.mxu0 %v152
    %v643 = vpop.f32.mrf.mxu0
    %v644 = vadd.f32 0.0, %v643
    %v645 = vpop.f32.mrf.mxu0
    %v646 = vadd.f32 0.0, %v645
    %647 = vdwg.mxu0
    %v648 = vadd.f32 %v454, %v638
    %v649 = vadd.f32 %v460, %v644
    %v650 = vxor.u32 %v648, 2147483648
    %v651 = vxor.u32 %v649, 2147483648
    %v652 = vmul.f32 %v650, 1.442695
    %v653 = vpow.pop %v652
    %v654 = vmul.f32 %v651, 1.442695
    %v655 = vpow.pop %v654
    %v656 = vadd.f32 %v653, 1.0
    %v657 = vadd.f32 %v655, 1.0
    %v658 = vrcp.pop %v656
    %v659 = vmul.f32 1.0, %v658
    %v660 = vrcp.pop %v657
    %v661 = vmul.f32 1.0, %v660
    %v662 = vadd.f32 %v456, %v640
    %v663 = vadd.f32 %v462, %v646
    %v664 = vxor.u32 %v662, 2147483648
    %v665 = vxor.u32 %v663, 2147483648
    %v666 = vmul.f32 %v664, 1.442695
    %v667 = vpow.pop %v666
    %v668 = vmul.f32 %v665, 1.442695
    %v669 = vpow.pop %v668
    %v670 = vadd.f32 %v667, 1.0
    %v671 = vadd.f32 %v669, 1.0
    %v672 = vrcp.pop %v670
    %v673 = vmul.f32 1.0, %v672
    %v674 = vrcp.pop %v671
    %v675 = vmul.f32 1.0, %v674
    %v676 = vmul.f32 %v673, %v147
    %v677 = vmul.f32 %v675, %v152
    %v678 = vld [vmem:[#allocation7] sm:$0xff]
    %v679 = vld [vmem:[#allocation7 + $0x8] sm:$0xff]
    %v680 = vld [vmem:[#allocation7 + $0x10] sm:$0xff]
    %v681 = vld [vmem:[#allocation7 + $0x18] sm:$0xff]
    %v682 = vld [vmem:[#allocation7 + $0x20] sm:$0xff]
    %v683 = vld [vmem:[#allocation7 + $0x28] sm:$0xff]
    %v684 = vld [vmem:[#allocation7 + $0x30] sm:$0xff]
    %v685 = vld [vmem:[#allocation7 + $0x38] sm:$0xff]
    %v686 = vld [vmem:[#allocation7 + $0x40] sm:$0xff]
    %v687 = vld [vmem:[#allocation7 + $0x48] sm:$0xff]
    %v688 = vld [vmem:[#allocation7 + $0x50] sm:$0xff]
    %v689 = vld [vmem:[#allocation7 + $0x58] sm:$0xff]
    %v690 = vld [vmem:[#allocation7 + $0x60] sm:$0xff]
    %v691 = vld [vmem:[#allocation7 + $0x68] sm:$0xff]
    %v692 = vld [vmem:[#allocation7 + $0x70] sm:$0xff]
    %v693 = vld [vmem:[#allocation7 + $0x78] sm:$0xff]
    %694 = vmatprep.subr.mxu0 0.0
    %695 = vmatpush1.msra.mxu0 %v693
    %696 = vmatprep.subr.mxu0 0.0
    %697 = vmatpush1.msra.mxu0 %v692
    %698 = vmatprep.subr.mxu0 0.0
    %699 = vmatpush1.msra.mxu0 %v691
    %700 = vmatprep.subr.mxu0 0.0
    %701 = vmatpush1.msra.mxu0 %v690
    %702 = vmatprep.subr.mxu0 0.0
    %703 = vmatpush1.msra.mxu0 %v689
    %704 = vmatprep.subr.mxu0 0.0
    %705 = vmatpush1.msra.mxu0 %v688
    %706 = vmatprep.subr.mxu0 0.0
    %707 = vmatpush1.msra.mxu0 %v687
    %708 = vmatprep.subr.mxu0 0.0
    %709 = vmatpush1.msra.mxu0 %v686
    %710 = vmatprep.subr.mxu0 0.0
    %711 = vmatpush1.msra.mxu0 %v685
    %712 = vmatprep.subr.mxu0 0.0
    %713 = vmatpush1.msra.mxu0 %v684
    %714 = vmatprep.subr.mxu0 0.0
    %715 = vmatpush1.msra.mxu0 %v683
    %716 = vmatprep.subr.mxu0 0.0
    %717 = vmatpush1.msra.mxu0 %v682
    %718 = vmatprep.subr.mxu0 0.0
    %719 = vmatpush1.msra.mxu0 %v681
    %720 = vmatprep.subr.mxu0 0.0
    %721 = vmatpush1.msra.mxu0 %v680
    %722 = vmatprep.subr.mxu0 0.0
    %723 = vmatpush1.msra.mxu0 %v679
    %724 = vmatprep.subr.mxu0 0.0
    %725 = vmatpush1.msra.mxu0 %v678
    %726 = vmatprep.subr.mxu0 0.0
    %727 = vmatpush2.msra.mxu0 0.0
    %728 = vmatprep.subr.mxu0 0.0
    %729 = vmatpush2.msra.mxu0 0.0
    %730 = vmatprep.subr.mxu0 0.0
    %731 = vmatpush2.msra.mxu0 0.0
    %732 = vmatprep.subr.mxu0 0.0
    %733 = vmatpush2.msra.mxu0 0.0
    %734 = vmatprep.subr.mxu0 0.0
    %735 = vmatpush2.msra.mxu0 0.0
    %736 = vmatprep.subr.mxu0 0.0
    %737 = vmatpush2.msra.mxu0 0.0
    %738 = vmatprep.subr.mxu0 0.0
    %739 = vmatpush2.msra.mxu0 0.0
    %740 = vmatprep.subr.mxu0 0.0
    %741 = vmatpush2.msra.mxu0 0.0
    %742 = vmatprep.subr.mxu0 0.0
    %743 = vmatpush2.msra.mxu0 0.0
    %744 = vmatprep.subr.mxu0 0.0
    %745 = vmatpush2.msra.mxu0 0.0
    %746 = vmatprep.subr.mxu0 0.0
    %747 = vmatpush2.msra.mxu0 0.0
    %748 = vmatprep.subr.mxu0 0.0
    %749 = vmatpush2.msra.mxu0 0.0
    %750 = vmatprep.subr.mxu0 0.0
    %751 = vmatpush2.msra.mxu0 0.0
    %752 = vmatprep.subr.mxu0 0.0
    %753 = vmatpush2.msra.mxu0 0.0
    %754 = vmatprep.subr.mxu0 0.0
    %755 = vmatpush2.msra.mxu0 0.0
    %756 = vmatprep.subr.mxu0 0.0
    %757 = vmatpush2.msra.mxu0 0.0
    %758 = vmatprep.mubr.f32.mxu0 0.0
    %759 = vmatmul.mubr.f32.gmra.mxu0 %v676
    %v760 = vpop.f32.mrf.mxu0
    %v761 = vadd.f32 0.0, %v760
    %v762 = vpop.f32.mrf.mxu0
    %763 = vmatprep.mubr.f32.mxu0 0.0
    %764 = vmatmul.mubr.f32.gmra.mxu0 %v677
    %v765 = vpop.f32.mrf.mxu0
    %v766 = vadd.f32 0.0, %v765
    %v767 = vpop.f32.mrf.mxu0
    %768 = vdwg.mxu0
    %v769 = vadd.f32 %v531, %v761
    %v770 = vadd.f32 %v536, %v766
    %v771 = vtanh.pop %v769
    %v772 = vtanh.pop %v770
    %v773 = vmul.f32 %v771, %v659
    %v774 = vmul.f32 %v772, %v661
    %v775 = vsub.f32 1.0, %v659
    %v776 = vsub.f32 1.0, %v661
    %v777 = vmul.f32 %v147, %v775
    %v778 = vmul.f32 %v152, %v776
    %v779 = vadd.f32 %v773, %v777
    %v780 = vadd.f32 %v774, %v778
    %781 = vst [vmem:[#allocation8] sm:$0xff] %v779
    %782 = vst [vmem:[#allocation8 + $0x8] sm:$0xff] %v780
    // Predicated region
    $region42: #{tpu_custom_call.1} parent=1 // pred_check
      _
    $region43: #{tpu_custom_call.1} parent=1 // pred_check_branch
      %784 = sbr.rel (0) target = $region45
    $region44: #{tpu_custom_call.1} parent=1 // pred_region
      %s786 = ssub.s32 256, 256
      %787 = vsyncadd [#allocation4], %s786
      %s788 = sshll.u32 [#allocation8], 4
      %s789 = int_to_ptr.vmem [resolvable:$true] %s788
      %794 = dma.vmem_to_hbm [thread:$0]  %s789, 256, %s7, [#allocation4], 128, 128, 8
    $region45: #{tpu_custom_call.1} parent=1 // pred_fallthru
      _
    // Predicated region
    $region46: #{tpu_custom_call.1} parent=1 // pred_check
      _
    $region47: #{tpu_custom_call.1} parent=1 // pred_check_branch
      %796 = sbr.rel (0) target = $region49
    $region48: #{tpu_custom_call.1} parent=1 // pred_region
      %797 = dma.done [#allocation4], 256
    $region49: #{tpu_custom_call.1} parent=1 // pred_fallthru
      _
    %798 = vsyncpa [#allocation3], 1
    %799 = vsyncpa [#allocation6], 1
    %800 = vsyncpa [#allocation4], 1

</llo_original>
